<compile_context>
chip_gen: v7x
topology: tpu7x:2x2x1
jax: 0.10.0
libtpu: 0.0.40
codegen_flags: <defaults>
</compile_context>

<pallas_src>
import functools

import jax
import jax.numpy as jnp
import numpy as np
from jax.experimental import pallas as pl
from jax.experimental.pallas import tpu as pltpu


def _round_up(n, m):
    return ((n + m - 1) // m) * m


def _cdiv(a, b):
    return -(-a // b)


# --------------------------------------------------------------------------- #
# Kernel body: one (tile_m, Hp) output tile.
# --------------------------------------------------------------------------- #
def _convgru_kernel(x_ref, h_ref, wx_ref, wh_ref, woh_ref, b_ref, out_ref, *, hp):
    """wx_ref : (Ip, 3*Hp)  fused [update | reset | out] x-side weights
    wh_ref : (Hp, 2*Hp)  fused [update | reset] h-side weights
    woh_ref: (Hp, Hp)    out-gate h-side weight (applied to h * reset)
    b_ref  : (1, 3*Hp)   fused biases (f32)
    """
    f32 = jnp.float32
    x = x_ref[...]
    h = h_ref[...]
    wdt = wx_ref.dtype  # f32 (exact path) or bf16 (fast MXU path); accumulate in f32

    # One wide x-side matmul for all three gates (+ fused bias broadcast) and
    # one wide h-side matmul for the update + reset gates.
    gx = jnp.dot(x.astype(wdt), wx_ref[...], preferred_element_type=f32) + b_ref[...]
    gh = jnp.dot(h.astype(wdt), wh_ref[...], preferred_element_type=f32)

    # hp is a multiple of 128 -> all slices below are lane-aligned (no shuffles).
    # Single wide sigmoid over the contiguous [update | reset] columns (one EUP pass).
    s = jax.nn.sigmoid(gx[:, : 2 * hp] + gh)
    upd = s[:, :hp]
    rst = s[:, hp:]

    cand = jnp.tanh(
        gx[:, 2 * hp:]
        + jnp.dot((h * rst).astype(wdt), woh_ref[...], preferred_element_type=f32))

    # new_state = h*(1-u) + cand*u  ==  h + u*(cand - h)
    out_ref[...] = h + upd * (cand - h)


# --------------------------------------------------------------------------- #
# Generation-aware sizing helpers.
# --------------------------------------------------------------------------- #
def _vmem_budget_bytes():
    # Conservative default (v7x-safe) if the query fails.
    cap = 64 * 1024 * 1024
    try:
        info = pltpu.get_tpu_info()
        cap = int(getattr(info, "vmem_capacity_bytes", cap))
    except Exception:
        pass
    # 3/4 of physical, never above 100 MiB: ~96 MiB on v5e/v6e (128 MiB),
    # ~48 MiB on v7x (64 MiB).
    return min(cap * 3 // 4, 100 * 1024 * 1024)


def _max_tile_rows(Ip, Hp, w_itemsize, vmem_budget):
    # Weights are single-buffered (pl.Buffered(1)); x/h/out tiles double-buffered f32.
    weight_bytes = (Ip * 3 * Hp + 3 * Hp * Hp) * w_itemsize + 3 * Hp * 4
    per_row_bytes = 2 * (Ip + 2 * Hp) * 4
    avail = vmem_budget - weight_bytes - (6 << 20)  # compiler / internal headroom
    t = avail // per_row_bytes if avail > 0 else 0
    t = (t // 8) * 8
    # TODO(synk): for very large H (>= ~1-2K) where the fused weights cannot stay
    # resident even in bf16 on v7x's 64 MiB VMEM, add an inner "arbitrary"
    # reduction grid axis over the contraction dim with an f32 VMEM accumulator.
    return int(max(128, min(2048, t)))


def _choose_tile_m(M, max_tile):
    if M < 8:
        return M  # block equals full dim -> allowed
    # At least 2 row blocks so dimension_semantics=("parallel",) can feed both
    # v7x TensorCores; derive the tile from M so the ragged tail wastes < 8 rows.
    n_blocks = max(_cdiv(M, max_tile), 2)
    tile = min(_round_up(_cdiv(M, n_blocks), 8), max_tile)
    return max(tile, 8)


# --------------------------------------------------------------------------- #
# One-time parameter preparation (hoist out of any time scan).
# --------------------------------------------------------------------------- #
def prepare_params(params, *, weight_dtype=jnp.float32):
    """Fuse + lane-pad + cast the step-invariant gate weights. Call ONCE."""
    I = params["wux"].shape[0]
    H = params["wuh"].shape[0]
    Ip = _round_up(I, 128)
    Hp = _round_up(H, 128)

    def pad_w(w, rows, cols):
        return jnp.zeros((rows, cols), jnp.float32).at[: w.shape[0], : w.shape[1]].set(w)

    wx_all = jnp.concatenate(
        [pad_w(params["wux"], Ip, Hp),
         pad_w(params["wrx"], Ip, Hp),
         pad_w(params["wox"], Ip, Hp)], axis=1).astype(weight_dtype)          # (Ip, 3*Hp)
    wh_ur = jnp.concatenate(
        [pad_w(params["wuh"], Hp, Hp),
         pad_w(params["wrh"], Hp, Hp)], axis=1).astype(weight_dtype)          # (Hp, 2*Hp)
    woh = pad_w(params["woh"], Hp, Hp).astype(weight_dtype)                   # (Hp, Hp)
    b_all = jnp.concatenate(
        [pad_w(params["bu"], 1, Hp),
         pad_w(params["br"], 1, Hp),
         pad_w(params["bo"], 1, Hp)], axis=1)                                 # (1, 3*Hp) f32
    return dict(wx=wx_all, wh_ur=wh_ur, woh=woh, b=b_all)


# --------------------------------------------------------------------------- #
# Wrapper.
# --------------------------------------------------------------------------- #
def convgru_cell_pallas(x, h, prepared, *, max_tile_m=None):
    """x: (B, S, I) f32, h: (B, S, H) f32, prepared = prepare_params(...)."""
    B, S, I = x.shape
    H = h.shape[-1]
    M = B * S

    wx_all, wh_ur, woh, b_all = prepared["wx"], prepared["wh_ur"], prepared["woh"], prepared["b"]
    Ip = wx_all.shape[0]
    Hp = woh.shape[0]
    w_itemsize = jnp.dtype(wx_all.dtype).itemsize

    vmem_budget = _vmem_budget_bytes()
    if max_tile_m is None:
        max_tile_m = _max_tile_rows(Ip, Hp, w_itemsize, vmem_budget)
    tile_m = _choose_tile_m(M, max_tile_m)
    grid_m = _cdiv(M, tile_m)

    # Lane-pad activations only when the feature dim is not a 128 multiple;
    # 128-aligned inputs go straight through with zero extra HBM traffic.
    x2 = x.reshape(M, I)
    h2 = h.reshape(M, H)
    if Ip != I:
        x2 = jnp.pad(x2, ((0, 0), (0, Ip - I)))
    if Hp != H:
        h2 = jnp.pad(h2, ((0, 0), (0, Hp - H)))

    rows = grid_m * tile_m
    cost = pl.CostEstimate(
        flops=2 * rows * (Ip * 3 * Hp + Hp * 2 * Hp + Hp * Hp),
        transcendentals=5 * rows * Hp,  # 2 sigmoid (exp+recip) + 1 tanh per element
        bytes_accessed=int((M * Ip + 2 * M * Hp + 3 * Hp) * 4
                           + (Ip * 3 * Hp + 3 * Hp * Hp) * w_itemsize),
    )

    const = dict(pipeline_mode=pl.Buffered(1))  # weights never change across the grid

    out2 = pl.pallas_call(
        functools.partial(_convgru_kernel, hp=Hp),
        out_shape=jax.ShapeDtypeStruct((M, Hp), jnp.float32),
        grid_spec=pltpu.PrefetchScalarGridSpec(
            num_scalar_prefetch=0,
            grid=(grid_m,),
            in_specs=[
                pl.BlockSpec((tile_m, Ip), lambda i: (i, 0)),              # x rows
                pl.BlockSpec((tile_m, Hp), lambda i: (i, 0)),              # h rows
                pl.BlockSpec((Ip, 3 * Hp), lambda i: (0, 0), **const),     # fused x-side W
                pl.BlockSpec((Hp, 2 * Hp), lambda i: (0, 0), **const),     # fused u/r h-side W
                pl.BlockSpec((Hp, Hp), lambda i: (0, 0), **const),         # out-gate h-side W
                pl.BlockSpec((1, 3 * Hp), lambda i: (0, 0), **const),      # fused biases
            ],
            out_specs=pl.BlockSpec((tile_m, Hp), lambda i: (i, 0)),
        ),
        compiler_params=pltpu.CompilerParams(
            dimension_semantics=("parallel",),   # shard M axis across v7x's 2 TCs
            vmem_limit_bytes=int(vmem_budget),
        ),
        cost_estimate=cost,
    )(x2, h2, wx_all, wh_ur, woh, b_all)

    if Hp != H:
        out2 = out2[:, :H]
    return out2.reshape(B, S, H)


# --------------------------------------------------------------------------- #
# Init + pure-JAX reference (mirrors the PyTorch module exactly).
# --------------------------------------------------------------------------- #
def init_params(key, input_size, hidden_size):
    """Orthogonal weights, zero biases — matches the module's init."""
    orth = jax.nn.initializers.orthogonal()
    ku, kr, ko = jax.random.split(key, 3)
    # PyTorch Linear weight is (out=H, in=I+H); store W^T split into x / h parts.
    wu = orth(ku, (hidden_size, input_size + hidden_size), jnp.float32).T
    wr = orth(kr, (hidden_size, input_size + hidden_size), jnp.float32).T
    wo = orth(ko, (hidden_size, input_size + hidden_size), jnp.float32).T
    zeros_b = jnp.zeros((1, hidden_size), jnp.float32)
    return dict(
        wux=wu[:input_size], wuh=wu[input_size:],
        wrx=wr[:input_size], wrh=wr[input_size:],
        wox=wo[:input_size], woh=wo[input_size:],
        bu=zeros_b, br=zeros_b, bo=zeros_b,
    )


def convgru_cell_ref(x, h, params):
    xh = jnp.concatenate([x, h], axis=2)
    wu = jnp.concatenate([params["wux"], params["wuh"]], axis=0)
    wr = jnp.concatenate([params["wrx"], params["wrh"]], axis=0)
    wo = jnp.concatenate([params["wox"], params["woh"]], axis=0)
    update = jax.nn.sigmoid(xh @ wu + params["bu"])
    reset = jax.nn.sigmoid(xh @ wr + params["br"])
    out_inputs = jnp.tanh(
        jnp.concatenate([x, h * reset], axis=2) @ wo + params["bo"])
    return h * (1.0 - update) + out_inputs * update


if __name__ == "__main__":
    key = jax.random.PRNGKey(0)
    kx, kh, kp, k2 = jax.random.split(key, 4)

    # --- small, unaligned feature dims (lane-padded path) ----------------------
    B, S, INPUT_SIZE, HIDDEN_SIZE = 2, 8, 16, 32
    x = jax.random.normal(kx, (B, S, INPUT_SIZE), jnp.float32)
    prev_state = jax.random.normal(kh, (B, S, HIDDEN_SIZE), jnp.float32)
    params = init_params(kp, INPUT_SIZE, HIDDEN_SIZE)
    ref = convgru_cell_ref(x, prev_state, params)

    prepared = prepare_params(params)                        # exact f32 weights
    new_state = jax.block_until_ready(convgru_cell_pallas(x, prev_state, prepared))
    np.testing.assert_allclose(np.asarray(new_state), np.asarray(ref),
                               rtol=1e-5, atol=1e-5)

    # bf16-weight fast-MXU path (looser tolerance by construction)
    prepared_bf16 = prepare_params(params, weight_dtype=jnp.bfloat16)
    new_state_bf16 = jax.block_until_ready(convgru_cell_pallas(x, prev_state, prepared_bf16))
    np.testing.assert_allclose(np.asarray(new_state_bf16), np.asarray(ref),
                               rtol=1e-1, atol=1e-1)

    # --- 128-aligned feature dims: no activation pad/slice, ragged last row block
    B2, S2, I2, H2 = 2, 9, 128, 128          # M = 18 -> tile_m 16, grid 2 (ragged tail)
    kx2, kh2, kp2 = jax.random.split(k2, 3)
    x_a = jax.random.normal(kx2, (B2, S2, I2), jnp.float32)
    h_a = jax.random.normal(kh2, (B2, S2, H2), jnp.float32)
    params_a = init_params(kp2, I2, H2)
    prepared_a = prepare_params(params_a)
    out_a = jax.block_until_ready(convgru_cell_pallas(x_a, h_a, prepared_a))
    ref_a = convgru_cell_ref(x_a, h_a, params_a)
    np.testing.assert_allclose(np.asarray(out_a), np.asarray(ref_a),
                               rtol=1e-5, atol=1e-5)

    print("KERNEL_OK")
</pallas_src>

<mosaic_0001>
module attributes {stable_mosaic.version = 11 : i64} {
  func.func @_convgru_kernel(%arg0: i32, %arg1: memref<8x128xf32, #tpu.memory_space<vmem>>, %arg2: memref<8x128xf32, #tpu.memory_space<vmem>>, %arg3: memref<128x384xf32, #tpu.memory_space<vmem>>, %arg4: memref<128x256xf32, #tpu.memory_space<vmem>>, %arg5: memref<128x128xf32, #tpu.memory_space<vmem>>, %arg6: memref<1x384xf32, #tpu.memory_space<vmem>>, %arg7: memref<8x128xf32, #tpu.memory_space<vmem>>) attributes {dimension_semantics = [#tpu.dimension_semantics<parallel>], iteration_bounds = array<i64: 2>, scalar_prefetch = 0 : i64, scratch_operands = 0 : i64, tpu.core_type = #tpu.core_type<tc>, window_params = [{transform_indices = @transform_0, window_bounds = array<i64: 8, 128>}, {transform_indices = @transform_1, window_bounds = array<i64: 8, 128>}, {pipeline_mode = #tpu.pipeline_mode<synchronous>, transform_indices = @transform_2, window_bounds = array<i64: 128, 384>}, {pipeline_mode = #tpu.pipeline_mode<synchronous>, transform_indices = @transform_3, window_bounds = array<i64: 128, 256>}, {pipeline_mode = #tpu.pipeline_mode<synchronous>, transform_indices = @transform_4, window_bounds = array<i64: 128, 128>}, {pipeline_mode = #tpu.pipeline_mode<synchronous>, transform_indices = @transform_5, window_bounds = array<i64: 1, 384>}, {transform_indices = @transform_6, window_bounds = array<i64: 8, 128>}]} {
    %c0 = arith.constant 0 : index
    %c0_0 = arith.constant 0 : index
    %0 = vector.load %arg1[%c0, %c0_0] : memref<8x128xf32, #tpu.memory_space<vmem>>, vector<8x128xf32>
    %c0_1 = arith.constant 0 : index
    %c0_2 = arith.constant 0 : index
    %1 = vector.load %arg2[%c0_1, %c0_2] : memref<8x128xf32, #tpu.memory_space<vmem>>, vector<8x128xf32>
    %c0_3 = arith.constant 0 : index
    %c0_4 = arith.constant 0 : index
    %2 = vector.load %arg3[%c0_3, %c0_4] : memref<128x384xf32, #tpu.memory_space<vmem>>, vector<128x384xf32>
    %cst = arith.constant dense<0.000000e+00> : vector<8x384xf32>
    %3 = tpu.matmul %0, %2, %cst {dimension_numbers = #tpu.dot_dimension_numbers<[1], [0], [0], [1], [0, 0, 1, 1], [], []>} : vector<8x128xf32>, vector<128x384xf32>, vector<8x384xf32> -> vector<8x384xf32>
    %c0_5 = arith.constant 0 : index
    %c0_6 = arith.constant 0 : index
    %4 = vector.load %arg6[%c0_5, %c0_6] : memref<1x384xf32, #tpu.memory_space<vmem>>, vector<1x384xf32>
    %5 = vector.broadcast %4 : vector<1x384xf32> to vector<8x384xf32>
    %6 = arith.addf %3, %5 : vector<8x384xf32>
    %c0_7 = arith.constant 0 : index
    %c0_8 = arith.constant 0 : index
    %7 = vector.load %arg4[%c0_7, %c0_8] : memref<128x256xf32, #tpu.memory_space<vmem>>, vector<128x256xf32>
    %cst_9 = arith.constant dense<0.000000e+00> : vector<8x256xf32>
    %8 = tpu.matmul %1, %7, %cst_9 {dimension_numbers = #tpu.dot_dimension_numbers<[1], [0], [0], [1], [0, 0, 1, 1], [], []>} : vector<8x128xf32>, vector<128x256xf32>, vector<8x256xf32> -> vector<8x256xf32>
    %9 = vector.extract_strided_slice %6 {offsets = [0, 0], sizes = [8, 256], strides = [1, 1]} : vector<8x384xf32> to vector<8x256xf32>
    %10 = arith.addf %9, %8 : vector<8x256xf32>
    %11 = arith.negf %10 : vector<8x256xf32>
    %12 = math.exp %11 : vector<8x256xf32>
    %cst_10 = arith.constant 1.000000e+00 : f32
    %13 = vector.broadcast %cst_10 : f32 to vector<8x256xf32>
    %14 = arith.addf %13, %12 : vector<8x256xf32>
    %15 = arith.divf %13, %14 : vector<8x256xf32>
    %16 = vector.extract_strided_slice %15 {offsets = [0, 0], sizes = [8, 128], strides = [1, 1]} : vector<8x256xf32> to vector<8x128xf32>
    %17 = vector.extract_strided_slice %15 {offsets = [0, 128], sizes = [8, 128], strides = [1, 1]} : vector<8x256xf32> to vector<8x128xf32>
    %18 = vector.extract_strided_slice %6 {offsets = [0, 256], sizes = [8, 128], strides = [1, 1]} : vector<8x384xf32> to vector<8x128xf32>
    %19 = arith.mulf %1, %17 : vector<8x128xf32>
    %c0_11 = arith.constant 0 : index
    %c0_12 = arith.constant 0 : index
    %20 = vector.load %arg5[%c0_11, %c0_12] : memref<128x128xf32, #tpu.memory_space<vmem>>, vector<128x128xf32>
    %cst_13 = arith.constant dense<0.000000e+00> : vector<8x128xf32>
    %21 = tpu.matmul %19, %20, %cst_13 {dimension_numbers = #tpu.dot_dimension_numbers<[1], [0], [0], [1], [0, 0, 1, 1], [], []>} : vector<8x128xf32>, vector<128x128xf32>, vector<8x128xf32> -> vector<8x128xf32>
    %22 = arith.addf %18, %21 : vector<8x128xf32>
    %23 = math.tanh %22 : vector<8x128xf32>
    %24 = arith.subf %23, %1 : vector<8x128xf32>
    %25 = arith.mulf %16, %24 : vector<8x128xf32>
    %26 = arith.addf %1, %25 : vector<8x128xf32>
    %c0_14 = arith.constant 0 : index
    %c0_15 = arith.constant 0 : index
    %27 = vector.load %arg7[%c0_14, %c0_15] : memref<8x128xf32, #tpu.memory_space<vmem>>, vector<8x128xf32>
    tpu.vector_store %arg7[%c0_14, %c0_15], %26 {strides = array<i32>} : memref<8x128xf32, #tpu.memory_space<vmem>>, vector<8x128xf32>,
    return
  }
  func.func @transform_0(%arg0: i32) -> (i32, i32) {
    %c0_i32 = arith.constant 0 : i32
    %c0_i32_0 = arith.constant 0 : i32
    return %arg0, %c0_i32 : i32, i32
  }
  func.func @transform_1(%arg0: i32) -> (i32, i32) {
    %c0_i32 = arith.constant 0 : i32
    %c0_i32_0 = arith.constant 0 : i32
    return %arg0, %c0_i32 : i32, i32
  }
  func.func @transform_2(%arg0: i32) -> (i32, i32) {
    %c0_i32 = arith.constant 0 : i32
    %c0_i32_0 = arith.constant 0 : i32
    %c0_i32_1 = arith.constant 0 : i32
    return %c0_i32, %c0_i32_0 : i32, i32
  }
  func.func @transform_3(%arg0: i32) -> (i32, i32) {
    %c0_i32 = arith.constant 0 : i32
    %c0_i32_0 = arith.constant 0 : i32
    %c0_i32_1 = arith.constant 0 : i32
    return %c0_i32, %c0_i32_0 : i32, i32
  }
  func.func @transform_4(%arg0: i32) -> (i32, i32) {
    %c0_i32 = arith.constant 0 : i32
    %c0_i32_0 = arith.constant 0 : i32
    %c0_i32_1 = arith.constant 0 : i32
    return %c0_i32, %c0_i32_0 : i32, i32
  }
  func.func @transform_5(%arg0: i32) -> (i32, i32) {
    %c0_i32 = arith.constant 0 : i32
    %c0_i32_0 = arith.constant 0 : i32
    %c0_i32_1 = arith.constant 0 : i32
    return %c0_i32, %c0_i32_0 : i32, i32
  }
  func.func @transform_6(%arg0: i32) -> (i32, i32) {
    %c0_i32 = arith.constant 0 : i32
    %c0_i32_0 = arith.constant 0 : i32
    return %arg0, %c0_i32 : i32, i32
  }
}

</mosaic_0001>

<llo_original>
// kernel: tpu_custom_call.1
$region0: #{tpu_custom_call.1}
  #allocation0 [shape = 'u32[]', space=smem, size = 0x4, offset = 0x4, fixed_abs, tag = 'smem constant byte address 0x4 - core index']
  #allocation1 [shape = 'u32[144,128]{1,0:T(1,128)}', space=vmem, size = 0x12000, scoped, tag = 'internal scratch']
  %s0 = inlined_call_operand.hbm [shape: f32[16,128], index: 0, kind: input, shape index: {}]
  %s1 = inlined_call_operand.hbm [shape: f32[16,128], index: 1, kind: input, shape index: {}]
  %s2 = inlined_call_operand.hbm [shape: f32[128,384], index: 2, kind: input, shape index: {}]
  %s3 = inlined_call_operand.hbm [shape: f32[128,256], index: 3, kind: input, shape index: {}]
  %s4 = inlined_call_operand.hbm [shape: f32[128,128], index: 4, kind: input, shape index: {}]
  %s5 = inlined_call_operand.vmem [shape: f32[1,384], index: 5, kind: input, shape index: {}]
  %s6 = inlined_call_operand.hbm [shape: f32[16,128], index: 6, kind: output, shape index: {}]
  %s7 = sld [smem:[#allocation0]]
  $region77: #{tpu_custom_call.1} parent=0
    _
  %s9 = ssub.s32 1, %s7
  %s10 = scalar_select 0, %s9, %s7
  $region1: #{tpu_custom_call.1} parent=0
    #allocation2 [shape = 'u8[8192]{0}', space=vmem, size = 0x2000, scoped, tag = 'input window, operand 0']
    #allocation3 [shape = 's32[2]{0}', space=sflag, size = 0x8, scoped, tag = 'scoped memory for tpu_custom_call.1']
    #allocation4 [shape = 's32[2]{0}', space=sflag, size = 0x8, scoped, tag = 'scoped memory for tpu_custom_call.1']
    #allocation5 [shape = 'u8[8192]{0}', space=vmem, size = 0x2000, scoped, tag = 'input window, operand 1']
    #allocation6 [shape = 's32[2]{0}', space=sflag, size = 0x8, scoped, tag = 'scoped memory for tpu_custom_call.1']
    #allocation7 [shape = 'u8[196608]{0}', space=vmem, size = 0x30000, scoped, tag = 'input window, operand 2, single buffered']
    #allocation8 [shape = 'u8[131072]{0}', space=vmem, size = 0x20000, scoped, tag = 'input window, operand 3, single buffered']
    #allocation9 [shape = 's32[1]{0}', space=sflag, size = 0x4, scoped, tag = 'scoped memory for tpu_custom_call.1']
    #allocation10 [shape = 'u8[65536]{0}', space=vmem, size = 0x10000, scoped, tag = 'input window, operand 4, single buffered']
    #allocation11 [shape = 'u8[8192]{0}', space=vmem, size = 0x2000, scoped, tag = 'output window, operand 0']
    %11 = vsyncpa [#allocation3], 0
    %s12 = scalar_lea.sflag [#allocation3], 1
    %13 = vsyncpa %s12, 0
    %14 = vsyncpa [#allocation6], 0
    %s15 = scalar_lea.sflag [#allocation6], 1
    %16 = vsyncpa %s15, 0
    %17 = vsyncpa [#allocation9], 0
    %18 = vsyncpa [#allocation4], 0
    %s19 = scalar_lea.sflag [#allocation4], 1
    %20 = vsyncpa %s19, 0
    loop: start=0, step=1, limit=4
    $region2: #{tpu_custom_call.1} parent=1 // loop_pre_header
      _
    $region3: #{tpu_custom_call.1} parent=1 // loop_header
      %s22 = sphi 0, %s26
      %p23 = scmp.ge.s32.totalorder %s22, 4
      %s32 = sphi 0, %s34
      %s35 = sphi 0, %s32
      %s36 = sphi 0, %s35
      %s52 = sphi 0, %s36
      %s58 = sphi 0, %s60
      %s61 = sphi 0, %s58
      %s62 = sphi 0, %s61
      %s78 = sphi 0, %s62
      %s82 = sphi 0, %s82
      %s84 = sphi 0, %s82
      %s85 = sphi 0, %s84
      %s99 = sphi 0, %s85
      %s103 = sphi 0, %s103
      %s105 = sphi 0, %s103
      %s106 = sphi 0, %s105
      %s120 = sphi 0, %s106
      %s124 = sphi 0, %s124
      %s126 = sphi 0, %s124
      %s127 = sphi 0, %s126
      %s141 = sphi 0, %s127
      %s145 = sphi 0, %s145
      %s147 = sphi 0, %s145
      %s148 = sphi 0, %s147
      %s162 = sphi 0, %s148
      %s168 = sphi 0, %s170
      %s171 = sphi 0, %s168
      %s172 = sphi 0, %s171
      %s188 = sphi 0, %s172
    $region4: #{tpu_custom_call.1} parent=1 // loop_header_branch
      %25 = sbr.rel (%p23) target = $region8
    $region5: #{tpu_custom_call.1} parent=1 // loop_body
      %s27 = ssub.s32 %s22, 1
      %s28 = ssub.s32 %s22, 2
      %s29 = sadd.s32 %s22, 1
      %s30 = ssub.s32 %s22, %s29
      %p31 = scmp.eq.s32.totalorder %s30, 0
      %s33 = sadd.s32 %s32, 1
      %s34 = scalar_select %p31, %s32, %s33
      %p37 = pneg %p31
      %p38 = scmp.eq.s32.totalorder %s22, 1
      %p39 = por %p37, %p38
      %p40 = scmp.ne.s32.totalorder %s32, %s35
      %p41 = scmp.eq.s32.totalorder %s22, 0
      %p42 = por %p40, %p41
      %p43 = scmp.ne.s32.totalorder %s32, %s35
      %p44 = scmp.eq.s32.totalorder %s27, 1
      %p45 = por %p43, %p44
      %p46 = scmp.ne.s32.totalorder %s35, %s36
      %p47 = scmp.eq.s32.totalorder %s27, 0
      %p48 = por %p46, %p47
      %p49 = scmp.ne.s32.totalorder %s35, %s36
      %p50 = scmp.eq.s32.totalorder %s28, 1
      %p51 = por %p49, %p50
      %p53 = scmp.ne.s32.totalorder %s36, %s52
      %p54 = scmp.eq.s32.totalorder %s28, 0
      %p55 = por %p53, %p54
      %s56 = ssub.s32 %s22, %s29
      %p57 = scmp.eq.s32.totalorder %s56, 0
      %s59 = sadd.s32 %s58, 1
      %s60 = scalar_select %p57, %s58, %s59
      %p63 = pneg %p57
      %p64 = scmp.eq.s32.totalorder %s22, 1
      %p65 = por %p63, %p64
      %p66 = scmp.ne.s32.totalorder %s58, %s61
      %p67 = scmp.eq.s32.totalorder %s22, 0
      %p68 = por %p66, %p67
      %p69 = scmp.ne.s32.totalorder %s58, %s61
      %p70 = scmp.eq.s32.totalorder %s27, 1
      %p71 = por %p69, %p70
      %p72 = scmp.ne.s32.totalorder %s61, %s62
      %p73 = scmp.eq.s32.totalorder %s27, 0
      %p74 = por %p72, %p73
      %p75 = scmp.ne.s32.totalorder %s61, %s62
      %p76 = scmp.eq.s32.totalorder %s28, 1
      %p77 = por %p75, %p76
      %p79 = scmp.ne.s32.totalorder %s62, %s78
      %p80 = scmp.eq.s32.totalorder %s28, 0
      %p81 = por %p79, %p80
      %s83 = sadd.s32 %s82, 1
      %p86 = scmp.eq.s32.totalorder %s22, 1
      %p87 = scmp.ne.s32.totalorder %s82, %s84
      %p88 = scmp.eq.s32.totalorder %s22, 0
      %p89 = por %p87, %p88
      %p90 = scmp.ne.s32.totalorder %s82, %s84
      %p91 = scmp.eq.s32.totalorder %s27, 1
      %p92 = por %p90, %p91
      %p93 = scmp.ne.s32.totalorder %s84, %s85
      %p94 = scmp.eq.s32.totalorder %s27, 0
      %p95 = por %p93, %p94
      %p96 = scmp.ne.s32.totalorder %s84, %s85
      %p97 = scmp.eq.s32.totalorder %s28, 1
      %p98 = por %p96, %p97
      %p100 = scmp.ne.s32.totalorder %s85, %s99
      %p101 = scmp.eq.s32.totalorder %s28, 0
      %p102 = por %p100, %p101
      %s104 = sadd.s32 %s103, 1
      %p107 = scmp.eq.s32.totalorder %s22, 1
      %p108 = scmp.ne.s32.totalorder %s103, %s105
      %p109 = scmp.eq.s32.totalorder %s22, 0
      %p110 = por %p108, %p109
      %p111 = scmp.ne.s32.totalorder %s103, %s105
      %p112 = scmp.eq.s32.totalorder %s27, 1
      %p113 = por %p111, %p112
      %p114 = scmp.ne.s32.totalorder %s105, %s106
      %p115 = scmp.eq.s32.totalorder %s27, 0
      %p116 = por %p114, %p115
      %p117 = scmp.ne.s32.totalorder %s105, %s106
      %p118 = scmp.eq.s32.totalorder %s28, 1
      %p119 = por %p117, %p118
      %p121 = scmp.ne.s32.totalorder %s106, %s120
      %p122 = scmp.eq.s32.totalorder %s28, 0
      %p123 = por %p121, %p122
      %s125 = sadd.s32 %s124, 1
      %p128 = scmp.eq.s32.totalorder %s22, 1
      %p129 = scmp.ne.s32.totalorder %s124, %s126
      %p130 = scmp.eq.s32.totalorder %s22, 0
      %p131 = por %p129, %p130
      %p132 = scmp.ne.s32.totalorder %s124, %s126
      %p133 = scmp.eq.s32.totalorder %s27, 1
      %p134 = por %p132, %p133
      %p135 = scmp.ne.s32.totalorder %s126, %s127
      %p136 = scmp.eq.s32.totalorder %s27, 0
      %p137 = por %p135, %p136
      %p138 = scmp.ne.s32.totalorder %s126, %s127
      %p139 = scmp.eq.s32.totalorder %s28, 1
      %p140 = por %p138, %p139
      %p142 = scmp.ne.s32.totalorder %s127, %s141
      %p143 = scmp.eq.s32.totalorder %s28, 0
      %p144 = por %p142, %p143
      %s146 = sadd.s32 %s145, 1
      %p149 = scmp.eq.s32.totalorder %s22, 1
      %p150 = scmp.ne.s32.totalorder %s145, %s147
      %p151 = scmp.eq.s32.totalorder %s22, 0
      %p152 = por %p150, %p151
      %p153 = scmp.ne.s32.totalorder %s145, %s147
      %p154 = scmp.eq.s32.totalorder %s27, 1
      %p155 = por %p153, %p154
      %p156 = scmp.ne.s32.totalorder %s147, %s148
      %p157 = scmp.eq.s32.totalorder %s27, 0
      %p158 = por %p156, %p157
      %p159 = scmp.ne.s32.totalorder %s147, %s148
      %p160 = scmp.eq.s32.totalorder %s28, 1
      %p161 = por %p159, %p160
      %p163 = scmp.ne.s32.totalorder %s148, %s162
      %p164 = scmp.eq.s32.totalorder %s28, 0
      %p165 = por %p163, %p164
      %s166 = ssub.s32 %s22, %s29
      %p167 = scmp.eq.s32.totalorder %s166, 0
      %s169 = sadd.s32 %s168, 1
      %s170 = scalar_select %p167, %s168, %s169
      %p173 = pneg %p167
      %p174 = scmp.eq.s32.totalorder %s22, 1
      %p175 = por %p173, %p174
      %p176 = scmp.ne.s32.totalorder %s168, %s171
      %p177 = scmp.eq.s32.totalorder %s22, 0
      %p178 = por %p176, %p177
      %p179 = scmp.ne.s32.totalorder %s168, %s171
      %p180 = scmp.eq.s32.totalorder %s27, 1
      %p181 = por %p179, %p180
      %p182 = scmp.ne.s32.totalorder %s171, %s172
      %p183 = scmp.eq.s32.totalorder %s27, 0
      %p184 = por %p182, %p183
      %p185 = scmp.ne.s32.totalorder %s171, %s172
      %p186 = scmp.eq.s32.totalorder %s28, 1
      %p187 = por %p185, %p186
      %p189 = scmp.ne.s32.totalorder %s172, %s188
      %p190 = scmp.eq.s32.totalorder %s28, 0
      %p191 = por %p189, %p190
      %p192 = scmp.le.s32.totalorder 1, %s22
      %p193 = scmp.lt.s32.totalorder %s22, 3
      %p194 = pnand %p192, %p193
      %p195 = pneg %p194
      // Predicated region
      $region9: #{tpu_custom_call.1} parent=5 // pred_check
        _
      $region10: #{tpu_custom_call.1} parent=5 // pred_check_branch
        %197 = sbr.rel (%p194) target = $region12
      $region11: #{tpu_custom_call.1} parent=5 // pred_region
        %s198 = ssub.s32 %s22, 1
        // Predicated region
        $region13: #{tpu_custom_call.1} parent=11 // pred_check
          %p199 = pneg %p95
        $region14: #{tpu_custom_call.1} parent=11 // pred_check_branch
          %201 = sbr.rel (%p199) target = $region16
        $region15: #{tpu_custom_call.1} parent=11 // pred_region
          %s203 = ssub.s32 6144, 6144
          %204 = vsyncadd [#allocation6], %s203
          %s205 = sshll.u32 [#allocation7], 4
          %s206 = int_to_ptr.vmem [resolvable:$true] %s205
          %211 = dma.hbm_to_vmem [thread:$0]  %s2, 6144, %s206, [#allocation6], 384, 384, 24
        $region16: #{tpu_custom_call.1} parent=11 // pred_fallthru
          _
        // Predicated region
        $region17: #{tpu_custom_call.1} parent=11 // pred_check
          %p212 = pneg %p116
        $region18: #{tpu_custom_call.1} parent=11 // pred_check_branch
          %214 = sbr.rel (%p212) target = $region20
        $region19: #{tpu_custom_call.1} parent=11 // pred_region
          %s216 = ssub.s32 4096, 4096
          %217 = vsyncadd [#allocation9], %s216
          %s218 = sshll.u32 [#allocation8], 4
          %s219 = int_to_ptr.vmem [resolvable:$true] %s218
          %224 = dma.hbm_to_vmem [thread:$0]  %s3, 4096, %s219, [#allocation9], 256, 256, 16
        $region20: #{tpu_custom_call.1} parent=11 // pred_fallthru
          _
        // Predicated region
        $region21: #{tpu_custom_call.1} parent=11 // pred_check
          %p225 = pneg %p137
        $region22: #{tpu_custom_call.1} parent=11 // pred_check_branch
          %227 = sbr.rel (%p225) target = $region24
        $region23: #{tpu_custom_call.1} parent=11 // pred_region
          %s229 = ssub.s32 2048, 2048
          %230 = vsyncadd [#allocation9], %s229
          %s231 = sshll.u32 [#allocation10], 4
          %s232 = int_to_ptr.vmem [resolvable:$true] %s231
          %237 = dma.hbm_to_vmem [thread:$0]  %s4, 2048, %s232, [#allocation9], 128, 128, 8
        $region24: #{tpu_custom_call.1} parent=11 // pred_fallthru
          _
        // Predicated region
        $region25: #{tpu_custom_call.1} parent=11 // pred_check
          %p238 = pneg %p158
        $region26: #{tpu_custom_call.1} parent=11 // pred_check_branch
          %240 = sbr.rel (%p238) target = $region28
        $region27: #{tpu_custom_call.1} parent=11 // pred_region
          _
        $region28: #{tpu_custom_call.1} parent=11 // pred_fallthru
          _
      $region12: #{tpu_custom_call.1} parent=5 // pred_fallthru
        _
      %p241 = scmp.lt.s32.totalorder %s22, 2
      // Predicated region
      $region29: #{tpu_custom_call.1} parent=5 // pred_check
        %p242 = pneg %p241
      $region30: #{tpu_custom_call.1} parent=5 // pred_check_branch
        %244 = sbr.rel (%p242) target = $region32
      $region31: #{tpu_custom_call.1} parent=5 // pred_region
        // Predicated region
        $region33: #{tpu_custom_call.1} parent=31 // pred_check
          %p245 = pneg %p42
        $region34: #{tpu_custom_call.1} parent=31 // pred_check_branch
          %247 = sbr.rel (%p245) target = $region36
        $region35: #{tpu_custom_call.1} parent=31 // pred_region
          %s248 = sand.u32 %s32, 1
          %s249 = scalar_lea.sflag [#allocation3], %s248
          %s250 = sand.u32 %s32, 1
          %s251 = smul.addr %s250, 8
          %s252 = scalar_lea.vmem [#allocation2], %s251
          %s254 = ssub.s32 128, 128
          %255 = vsyncadd %s249, %s254
          %s256 = smul.addr %s22, 128
          %s257 = scalar_lea.hbm %s0, %s256
          %s259 = sshll.u32 %s252, 4
          %s260 = int_to_ptr.vmem [resolvable:$true] %s259
          %262 = dma.hbm_to_vmem [thread:$0]  %s257, 128, %s260, %s249
        $region36: #{tpu_custom_call.1} parent=31 // pred_fallthru
          _
        // Predicated region
        $region37: #{tpu_custom_call.1} parent=31 // pred_check
          %p263 = pneg %p68
        $region38: #{tpu_custom_call.1} parent=31 // pred_check_branch
          %265 = sbr.rel (%p263) target = $region40
        $region39: #{tpu_custom_call.1} parent=31 // pred_region
          %s266 = sand.u32 %s22, 1
          %s267 = scalar_lea.sflag [#allocation6], %s266
          %s268 = sand.u32 %s58, 1
          %s269 = smul.addr %s268, 8
          %s270 = scalar_lea.vmem [#allocation5], %s269
          %s272 = ssub.s32 128, 128
          %273 = vsyncadd %s267, %s272
          %s274 = smul.addr %s22, 128
          %s275 = scalar_lea.hbm %s1, %s274
          %s277 = sshll.u32 %s270, 4
          %s278 = int_to_ptr.vmem [resolvable:$true] %s277
          %280 = dma.hbm_to_vmem [thread:$0]  %s275, 128, %s278, %s267
        $region40: #{tpu_custom_call.1} parent=31 // pred_fallthru
          _
      $region32: #{tpu_custom_call.1} parent=5 // pred_fallthru
        _
      %p281 = scmp.le.s32.totalorder 1, %s22
      %p282 = scmp.lt.s32.totalorder %s22, 3
      %p283 = pnand %p281, %p282
      %p284 = pneg %p283
      // Predicated region
      $region41: #{tpu_custom_call.1} parent=5 // pred_check
        _
      $region42: #{tpu_custom_call.1} parent=5 // pred_check_branch
        %286 = sbr.rel (%p283) target = $region44
      $region43: #{tpu_custom_call.1} parent=5 // pred_region
        %s287 = ssub.s32 %s22, 1
        %s288 = sand.u32 %s35, 1
        %s289 = scalar_lea.sflag [#allocation3], %s288
        %s290 = sand.u32 %s35, 1
        %s291 = smul.addr %s290, 8
        %s292 = scalar_lea.vmem [#allocation2], %s291
        // Predicated region
        $region45: #{tpu_custom_call.1} parent=43 // pred_check
          %p293 = pneg %p48
        $region46: #{tpu_custom_call.1} parent=43 // pred_check_branch
          %295 = sbr.rel (%p293) target = $region48
        $region47: #{tpu_custom_call.1} parent=43 // pred_region
          %296 = dma.done %s289, 128
        $region48: #{tpu_custom_call.1} parent=43 // pred_fallthru
          _
        %s297 = sand.u32 %s27, 1
        %s298 = scalar_lea.sflag [#allocation6], %s297
        %s299 = sand.u32 %s61, 1
        %s300 = smul.addr %s299, 8
        %s301 = scalar_lea.vmem [#allocation5], %s300
        // Predicated region
        $region49: #{tpu_custom_call.1} parent=43 // pred_check
          %p302 = pneg %p74
        $region50: #{tpu_custom_call.1} parent=43 // pred_check_branch
          %304 = sbr.rel (%p302) target = $region52
        $region51: #{tpu_custom_call.1} parent=43 // pred_region
          %305 = dma.done %s298, 128
        $region52: #{tpu_custom_call.1} parent=43 // pred_fallthru
          _
        // Predicated region
        $region53: #{tpu_custom_call.1} parent=43 // pred_check
          %p306 = pneg %p95
        $region54: #{tpu_custom_call.1} parent=43 // pred_check_branch
          %308 = sbr.rel (%p306) target = $region56
        $region55: #{tpu_custom_call.1} parent=43 // pred_region
          %309 = dma.done [#allocation6], 6144
        $region56: #{tpu_custom_call.1} parent=43 // pred_fallthru
          _
        // Predicated region
        $region57: #{tpu_custom_call.1} parent=43 // pred_check
          %p310 = pneg %p116
        $region58: #{tpu_custom_call.1} parent=43 // pred_check_branch
          %312 = sbr.rel (%p310) target = $region60
        $region59: #{tpu_custom_call.1} parent=43 // pred_region
          %313 = dma.done [#allocation9], 4096
        $region60: #{tpu_custom_call.1} parent=43 // pred_fallthru
          _
        // Predicated region
        $region61: #{tpu_custom_call.1} parent=43 // pred_check
          %p314 = pneg %p137
        $region62: #{tpu_custom_call.1} parent=43 // pred_check_branch
          %316 = sbr.rel (%p314) target = $region64
        $region63: #{tpu_custom_call.1} parent=43 // pred_region
          %317 = dma.done [#allocation9], 2048
        $region64: #{tpu_custom_call.1} parent=43 // pred_fallthru
          _
        %s318 = sand.u32 %s35, 1
        %s319 = scalar_lea.sflag [#allocation3], %s318
        %s320 = sand.u32 %s35, 1
        %s321 = smul.addr %s320, 8
        %s322 = scalar_lea.vmem [#allocation2], %s321
        %p323 = pneg %p48
        %p324 = pneg %p45
        %s325 = sand.u32 %s27, 1
        %s326 = scalar_lea.sflag [#allocation6], %s325
        %s327 = sand.u32 %s61, 1
        %s328 = smul.addr %s327, 8
        %s329 = scalar_lea.vmem [#allocation5], %s328
        %p330 = pneg %p74
        %p331 = pneg %p71
        %p332 = pneg %p95
        %p333 = pneg %p92
        %p334 = pneg %p116
        %p335 = pneg %p113
        %p336 = pneg %p137
        %p337 = pneg %p134
        %p338 = pneg %p158
        %p339 = pneg %p155
        %p340 = pneg %p184
        %p341 = pneg %p181
        %s342 = sand.u32 %s171, 1
        %s343 = scalar_lea.sflag [#allocation4], %s342
        %s344 = sand.u32 %s171, 1
        %s345 = smul.addr %s344, 8
        %s346 = scalar_lea.vmem [#allocation11], %s345
        %v347 = vld [vmem:[%s292] sm:$0xff]
        %v348 = vld [vmem:[%s301] sm:$0xff]
        %v349 = vld [vmem:[#allocation7] sm:$0xff]
        %v350 = vld [vmem:[#allocation7 + $0x8] sm:$0xff]
        %v351 = vld [vmem:[#allocation7 + $0x10] sm:$0xff]
        %v352 = vld [vmem:[#allocation7 + $0x18] sm:$0xff]
        %v353 = vld [vmem:[#allocation7 + $0x20] sm:$0xff]
        %v354 = vld [vmem:[#allocation7 + $0x28] sm:$0xff]
        %v355 = vld [vmem:[#allocation7 + $0x30] sm:$0xff]
        %v356 = vld [vmem:[#allocation7 + $0x38] sm:$0xff]
        %v357 = vld [vmem:[#allocation7 + $0x40] sm:$0xff]
        %v358 = vld [vmem:[#allocation7 + $0x48] sm:$0xff]
        %v359 = vld [vmem:[#allocation7 + $0x50] sm:$0xff]
        %v360 = vld [vmem:[#allocation7 + $0x58] sm:$0xff]
        %v361 = vld [vmem:[#allocation7 + $0x60] sm:$0xff]
        %v362 = vld [vmem:[#allocation7 + $0x68] sm:$0xff]
        %v363 = vld [vmem:[#allocation7 + $0x70] sm:$0xff]
        %v364 = vld [vmem:[#allocation7 + $0x78] sm:$0xff]
        %v365 = vld [vmem:[#allocation7 + $0x80] sm:$0xff]
        %v366 = vld [vmem:[#allocation7 + $0x88] sm:$0xff]
        %v367 = vld [vmem:[#allocation7 + $0x90] sm:$0xff]
        %v368 = vld [vmem:[#allocation7 + $0x98] sm:$0xff]
        %v369 = vld [vmem:[#allocation7 + $0xa0] sm:$0xff]
        %v370 = vld [vmem:[#allocation7 + $0xa8] sm:$0xff]
        %v371 = vld [vmem:[#allocation7 + $0xb0] sm:$0xff]
        %v372 = vld [vmem:[#allocation7 + $0xb8] sm:$0xff]
        %v373 = vld [vmem:[#allocation7 + $0xc0] sm:$0xff]
        %v374 = vld [vmem:[#allocation7 + $0xc8] sm:$0xff]
        %v375 = vld [vmem:[#allocation7 + $0xd0] sm:$0xff]
        %v376 = vld [vmem:[#allocation7 + $0xd8] sm:$0xff]
        %v377 = vld [vmem:[#allocation7 + $0xe0] sm:$0xff]
        %v378 = vld [vmem:[#allocation7 + $0xe8] sm:$0xff]
        %v379 = vld [vmem:[#allocation7 + $0xf0] sm:$0xff]
        %v380 = vld [vmem:[#allocation7 + $0xf8] sm:$0xff]
        %v381 = vld [vmem:[#allocation7 + $0x100] sm:$0xff]
        %v382 = vld [vmem:[#allocation7 + $0x108] sm:$0xff]
        %v383 = vld [vmem:[#allocation7 + $0x110] sm:$0xff]
        %v384 = vld [vmem:[#allocation7 + $0x118] sm:$0xff]
        %v385 = vld [vmem:[#allocation7 + $0x120] sm:$0xff]
        %v386 = vld [vmem:[#allocation7 + $0x128] sm:$0xff]
        %v387 = vld [vmem:[#allocation7 + $0x130] sm:$0xff]
        %v388 = vld [vmem:[#allocation7 + $0x138] sm:$0xff]
        %v389 = vld [vmem:[#allocation7 + $0x140] sm:$0xff]
        %v390 = vld [vmem:[#allocation7 + $0x148] sm:$0xff]
        %v391 = vld [vmem:[#allocation7 + $0x150] sm:$0xff]
        %v392 = vld [vmem:[#allocation7 + $0x158] sm:$0xff]
        %v393 = vld [vmem:[#allocation7 + $0x160] sm:$0xff]
        %v394 = vld [vmem:[#allocation7 + $0x168] sm:$0xff]
        %v395 = vld [vmem:[#allocation7 + $0x170] sm:$0xff]
        %v396 = vld [vmem:[#allocation7 + $0x178] sm:$0xff]
        %v397 = vld [vmem:[%s5] sm:$0x7]
        %v399 = vlaneseq
        %v400 = vshrl.u32 %v399, 7
        %v401 = vsub.s32 0, %v400
        %v402 = vrot.slane %v397, %v401
        %v403 = vlaneseq
        %v404 = vshrl.u32 %v403, 7
        %v405 = vsub.s32 1, %v404
        %v406 = vrot.slane %v397, %v405
        %v407 = vlaneseq
        %v408 = vshrl.u32 %v407, 7
        %v409 = vsub.s32 2, %v408
        %v410 = vrot.slane %v397, %v409
        %414 = vmatprep.subr.mxu0 %v350
        %415 = vmatpush1.msra.mxu0 %v349
        %416 = vmatprep.subr.mxu0 %v353
        %417 = vmatpush1.msra.mxu0 %v352
        %418 = vmatprep.subr.mxu0 %v356
        %419 = vmatpush1.msra.mxu0 %v355
        %420 = vmatprep.subr.mxu0 %v359
        %421 = vmatpush1.msra.mxu0 %v358
        %422 = vmatprep.subr.mxu0 %v362
        %423 = vmatpush1.msra.mxu0 %v361
        %424 = vmatprep.subr.mxu0 %v365
        %425 = vmatpush1.msra.mxu0 %v364
        %426 = vmatprep.subr.mxu0 %v368
        %427 = vmatpush1.msra.mxu0 %v367
        %428 = vmatprep.subr.mxu0 %v371
        %429 = vmatpush1.msra.mxu0 %v370
        %430 = vmatprep.subr.mxu0 %v374
        %431 = vmatpush1.msra.mxu0 %v373
        %432 = vmatprep.subr.mxu0 %v377
        %433 = vmatpush1.msra.mxu0 %v376
        %434 = vmatprep.subr.mxu0 %v380
        %435 = vmatpush1.msra.mxu0 %v379
        %436 = vmatprep.subr.mxu0 %v383
        %437 = vmatpush1.msra.mxu0 %v382
        %438 = vmatprep.subr.mxu0 %v386
        %439 = vmatpush1.msra.mxu0 %v385
        %440 = vmatprep.subr.mxu0 %v389
        %441 = vmatpush1.msra.mxu0 %v388
        %442 = vmatprep.subr.mxu0 %v392
        %443 = vmatpush1.msra.mxu0 %v391
        %444 = vmatprep.subr.mxu0 %v395
        %445 = vmatpush1.msra.mxu0 %v394
        %446 = vmatprep.subr.mxu0 0.0
        %447 = vmatpush1.msra.mxu0 0.0
        %448 = vmatprep.subr.mxu0 0.0
        %449 = vmatpush1.msra.mxu0 0.0
        %450 = vmatprep.subr.mxu0 0.0
        %451 = vmatpush1.msra.mxu0 0.0
        %452 = vmatprep.subr.mxu0 0.0
        %453 = vmatpush1.msra.mxu0 0.0
        %454 = vmatprep.subr.mxu0 0.0
        %455 = vmatpush1.msra.mxu0 0.0
        %456 = vmatprep.subr.mxu0 0.0
        %457 = vmatpush1.msra.mxu0 0.0
        %458 = vmatprep.subr.mxu0 0.0
        %459 = vmatpush1.msra.mxu0 0.0
        %460 = vmatprep.subr.mxu0 0.0
        %461 = vmatpush1.msra.mxu0 0.0
        %462 = vmatprep.subr.mxu0 0.0
        %463 = vmatpush1.msra.mxu0 0.0
        %464 = vmatprep.subr.mxu0 0.0
        %465 = vmatpush1.msra.mxu0 0.0
        %466 = vmatprep.subr.mxu0 0.0
        %467 = vmatpush1.msra.mxu0 0.0
        %468 = vmatprep.subr.mxu0 0.0
        %469 = vmatpush1.msra.mxu0 0.0
        %470 = vmatprep.subr.mxu0 0.0
        %471 = vmatpush1.msra.mxu0 0.0
        %472 = vmatprep.subr.mxu0 0.0
        %473 = vmatpush1.msra.mxu0 0.0
        %474 = vmatprep.subr.mxu0 0.0
        %475 = vmatpush1.msra.mxu0 0.0
        %476 = vmatprep.subr.mxu0 0.0
        %477 = vmatpush1.msra.mxu0 0.0
        %478 = vmatprep.mubr.f32.mxu0 0.0
        %479 = vmatmul.mubr.f32.gmra.mrb[0].mxu0 %v347
        %v480 = vpop.f32.mrb[0].mxu0
        %v481 = vadd.f32 %v402, %v480
        %v482 = vpop.f32.mrb[0].mxu0
        %v483 = vadd.f32 %v406, %v482
        %484 = vdwg.mxu0
        %485 = vmatprep.subr.mxu0 0.0
        %486 = vmatpush1.msra.mxu0 %v351
        %487 = vmatprep.subr.mxu0 0.0
        %488 = vmatpush1.msra.mxu0 %v354
        %489 = vmatprep.subr.mxu0 0.0
        %490 = vmatpush1.msra.mxu0 %v357
        %491 = vmatprep.subr.mxu0 0.0
        %492 = vmatpush1.msra.mxu0 %v360
        %493 = vmatprep.subr.mxu0 0.0
        %494 = vmatpush1.msra.mxu0 %v363
        %495 = vmatprep.subr.mxu0 0.0
        %496 = vmatpush1.msra.mxu0 %v366
        %497 = vmatprep.subr.mxu0 0.0
        %498 = vmatpush1.msra.mxu0 %v369
        %499 = vmatprep.subr.mxu0 0.0
        %500 = vmatpush1.msra.mxu0 %v372
        %501 = vmatprep.subr.mxu0 0.0
        %502 = vmatpush1.msra.mxu0 %v375
        %503 = vmatprep.subr.mxu0 0.0
        %504 = vmatpush1.msra.mxu0 %v378
        %505 = vmatprep.subr.mxu0 0.0
        %506 = vmatpush1.msra.mxu0 %v381
        %507 = vmatprep.subr.mxu0 0.0
        %508 = vmatpush1.msra.mxu0 %v384
        %509 = vmatprep.subr.mxu0 0.0
        %510 = vmatpush1.msra.mxu0 %v387
        %511 = vmatprep.subr.mxu0 0.0
        %512 = vmatpush1.msra.mxu0 %v390
        %513 = vmatprep.subr.mxu0 0.0
        %514 = vmatpush1.msra.mxu0 %v393
        %515 = vmatprep.subr.mxu0 0.0
        %516 = vmatpush1.msra.mxu0 %v396
        %517 = vmatprep.subr.mxu0 0.0
        %518 = vmatpush1.msra.mxu0 0.0
        %519 = vmatprep.subr.mxu0 0.0
        %520 = vmatpush1.msra.mxu0 0.0
        %521 = vmatprep.subr.mxu0 0.0
        %522 = vmatpush1.msra.mxu0 0.0
        %523 = vmatprep.subr.mxu0 0.0
        %524 = vmatpush1.msra.mxu0 0.0
        %525 = vmatprep.subr.mxu0 0.0
        %526 = vmatpush1.msra.mxu0 0.0
        %527 = vmatprep.subr.mxu0 0.0
        %528 = vmatpush1.msra.mxu0 0.0
        %529 = vmatprep.subr.mxu0 0.0
        %530 = vmatpush1.msra.mxu0 0.0
        %531 = vmatprep.subr.mxu0 0.0
        %532 = vmatpush1.msra.mxu0 0.0
        %533 = vmatprep.subr.mxu0 0.0
        %534 = vmatpush1.msra.mxu0 0.0
        %535 = vmatprep.subr.mxu0 0.0
        %536 = vmatpush1.msra.mxu0 0.0
        %537 = vmatprep.subr.mxu0 0.0
        %538 = vmatpush1.msra.mxu0 0.0
        %539 = vmatprep.subr.mxu0 0.0
        %540 = vmatpush1.msra.mxu0 0.0
        %541 = vmatprep.subr.mxu0 0.0
        %542 = vmatpush1.msra.mxu0 0.0
        %543 = vmatprep.subr.mxu0 0.0
        %544 = vmatpush1.msra.mxu0 0.0
        %545 = vmatprep.subr.mxu0 0.0
        %546 = vmatpush1.msra.mxu0 0.0
        %547 = vmatprep.subr.mxu0 0.0
        %548 = vmatpush1.msra.mxu0 0.0
        %549 = vmatprep.mubr.f32.mxu0 0.0
        %550 = vmatmul.mubr.f32.gmra.mrb[0].mxu0 %v347
        %v551 = vpop.f32.mrb[0].mxu0
        %v552 = vadd.f32 %v410, %v551
        %v553 = vpop.f32.mrb[0].mxu0
        %554 = vdwg.mxu0
        %v555 = vld [vmem:[#allocation8] sm:$0xff]
        %v556 = vld [vmem:[#allocation8 + $0x8] sm:$0xff]
        %v557 = vld [vmem:[#allocation8 + $0x10] sm:$0xff]
        %v558 = vld [vmem:[#allocation8 + $0x18] sm:$0xff]
        %v559 = vld [vmem:[#allocation8 + $0x20] sm:$0xff]
        %v560 = vld [vmem:[#allocation8 + $0x28] sm:$0xff]
        %v561 = vld [vmem:[#allocation8 + $0x30] sm:$0xff]
        %v562 = vld [vmem:[#allocation8 + $0x38] sm:$0xff]
        %v563 = vld [vmem:[#allocation8 + $0x40] sm:$0xff]
        %v564 = vld [vmem:[#allocation8 + $0x48] sm:$0xff]
        %v565 = vld [vmem:[#allocation8 + $0x50] sm:$0xff]
        %v566 = vld [vmem:[#allocation8 + $0x58] sm:$0xff]
        %v567 = vld [vmem:[#allocation8 + $0x60] sm:$0xff]
        %v568 = vld [vmem:[#allocation8 + $0x68] sm:$0xff]
        %v569 = vld [vmem:[#allocation8 + $0x70] sm:$0xff]
        %v570 = vld [vmem:[#allocation8 + $0x78] sm:$0xff]
        %v571 = vld [vmem:[#allocation8 + $0x80] sm:$0xff]
        %v572 = vld [vmem:[#allocation8 + $0x88] sm:$0xff]
        %v573 = vld [vmem:[#allocation8 + $0x90] sm:$0xff]
        %v574 = vld [vmem:[#allocation8 + $0x98] sm:$0xff]
        %v575 = vld [vmem:[#allocation8 + $0xa0] sm:$0xff]
        %v576 = vld [vmem:[#allocation8 + $0xa8] sm:$0xff]
        %v577 = vld [vmem:[#allocation8 + $0xb0] sm:$0xff]
        %v578 = vld [vmem:[#allocation8 + $0xb8] sm:$0xff]
        %v579 = vld [vmem:[#allocation8 + $0xc0] sm:$0xff]
        %v580 = vld [vmem:[#allocation8 + $0xc8] sm:$0xff]
        %v581 = vld [vmem:[#allocation8 + $0xd0] sm:$0xff]
        %v582 = vld [vmem:[#allocation8 + $0xd8] sm:$0xff]
        %v583 = vld [vmem:[#allocation8 + $0xe0] sm:$0xff]
        %v584 = vld [vmem:[#allocation8 + $0xe8] sm:$0xff]
        %v585 = vld [vmem:[#allocation8 + $0xf0] sm:$0xff]
        %v586 = vld [vmem:[#allocation8 + $0xf8] sm:$0xff]
        %587 = vmatprep.subr.mxu0 %v556
        %588 = vmatpush1.msra.mxu0 %v555
        %589 = vmatprep.subr.mxu0 %v558
        %590 = vmatpush1.msra.mxu0 %v557
        %591 = vmatprep.subr.mxu0 %v560
        %592 = vmatpush1.msra.mxu0 %v559
        %593 = vmatprep.subr.mxu0 %v562
        %594 = vmatpush1.msra.mxu0 %v561
        %595 = vmatprep.subr.mxu0 %v564
        %596 = vmatpush1.msra.mxu0 %v563
        %597 = vmatprep.subr.mxu0 %v566
        %598 = vmatpush1.msra.mxu0 %v565
        %599 = vmatprep.subr.mxu0 %v568
        %600 = vmatpush1.msra.mxu0 %v567
        %601 = vmatprep.subr.mxu0 %v570
        %602 = vmatpush1.msra.mxu0 %v569
        %603 = vmatprep.subr.mxu0 %v572
        %604 = vmatpush1.msra.mxu0 %v571
        %605 = vmatprep.subr.mxu0 %v574
        %606 = vmatpush1.msra.mxu0 %v573
        %607 = vmatprep.subr.mxu0 %v576
        %608 = vmatpush1.msra.mxu0 %v575
        %609 = vmatprep.subr.mxu0 %v578
        %610 = vmatpush1.msra.mxu0 %v577
        %611 = vmatprep.subr.mxu0 %v580
        %612 = vmatpush1.msra.mxu0 %v579
        %613 = vmatprep.subr.mxu0 %v582
        %614 = vmatpush1.msra.mxu0 %v581
        %615 = vmatprep.subr.mxu0 %v584
        %616 = vmatpush1.msra.mxu0 %v583
        %617 = vmatprep.subr.mxu0 %v586
        %618 = vmatpush1.msra.mxu0 %v585
        %619 = vmatprep.subr.mxu0 0.0
        %620 = vmatpush1.msra.mxu0 0.0
        %621 = vmatprep.subr.mxu0 0.0
        %622 = vmatpush1.msra.mxu0 0.0
        %623 = vmatprep.subr.mxu0 0.0
        %624 = vmatpush1.msra.mxu0 0.0
        %625 = vmatprep.subr.mxu0 0.0
        %626 = vmatpush1.msra.mxu0 0.0
        %627 = vmatprep.subr.mxu0 0.0
        %628 = vmatpush1.msra.mxu0 0.0
        %629 = vmatprep.subr.mxu0 0.0
        %630 = vmatpush1.msra.mxu0 0.0
        %631 = vmatprep.subr.mxu0 0.0
        %632 = vmatpush1.msra.mxu0 0.0
        %633 = vmatprep.subr.mxu0 0.0
        %634 = vmatpush1.msra.mxu0 0.0
        %635 = vmatprep.subr.mxu0 0.0
        %636 = vmatpush1.msra.mxu0 0.0
        %637 = vmatprep.subr.mxu0 0.0
        %638 = vmatpush1.msra.mxu0 0.0
        %639 = vmatprep.subr.mxu0 0.0
        %640 = vmatpush1.msra.mxu0 0.0
        %641 = vmatprep.subr.mxu0 0.0
        %642 = vmatpush1.msra.mxu0 0.0
        %643 = vmatprep.subr.mxu0 0.0
        %644 = vmatpush1.msra.mxu0 0.0
        %645 = vmatprep.subr.mxu0 0.0
        %646 = vmatpush1.msra.mxu0 0.0
        %647 = vmatprep.subr.mxu0 0.0
        %648 = vmatpush1.msra.mxu0 0.0
        %649 = vmatprep.subr.mxu0 0.0
        %650 = vmatpush1.msra.mxu0 0.0
        %651 = vmatprep.mubr.f32.mxu0 0.0
        %652 = vmatmul.mubr.f32.gmra.mrb[0].mxu0 %v348
        %v653 = vpop.f32.mrb[0].mxu0
        %v654 = vadd.f32 0.0, %v653
        %v655 = vpop.f32.mrb[0].mxu0
        %v656 = vadd.f32 0.0, %v655
        %657 = vdwg.mxu0
        %v658 = vadd.f32 %v481, %v654
        %v659 = vadd.f32 %v483, %v656
        %v660 = vxor.u32 %v658, 2147483648
        %v661 = vxor.u32 %v659, 2147483648
        %v662 = vmul.f32 %v660, 1.442695
        %v663 = vpow.pop %v662
        %v664 = vmul.f32 %v661, 1.442695
        %v665 = vpow.pop %v664
        %v666 = vadd.f32 %v663, 1.0
        %v667 = vadd.f32 %v665, 1.0
        %v668 = vrcp.pop %v666
        %v669 = vmul.f32 1.0, %v668
        %v670 = vrcp.pop %v667
        %v671 = vmul.f32 1.0, %v670
        %v672 = vmul.f32 %v348, %v671
        %v673 = vld [vmem:[#allocation10] sm:$0xff]
        %v674 = vld [vmem:[#allocation10 + $0x8] sm:$0xff]
        %v675 = vld [vmem:[#allocation10 + $0x10] sm:$0xff]
        %v676 = vld [vmem:[#allocation10 + $0x18] sm:$0xff]
        %v677 = vld [vmem:[#allocation10 + $0x20] sm:$0xff]
        %v678 = vld [vmem:[#allocation10 + $0x28] sm:$0xff]
        %v679 = vld [vmem:[#allocation10 + $0x30] sm:$0xff]
        %v680 = vld [vmem:[#allocation10 + $0x38] sm:$0xff]
        %v681 = vld [vmem:[#allocation10 + $0x40] sm:$0xff]
        %v682 = vld [vmem:[#allocation10 + $0x48] sm:$0xff]
        %v683 = vld [vmem:[#allocation10 + $0x50] sm:$0xff]
        %v684 = vld [vmem:[#allocation10 + $0x58] sm:$0xff]
        %v685 = vld [vmem:[#allocation10 + $0x60] sm:$0xff]
        %v686 = vld [vmem:[#allocation10 + $0x68] sm:$0xff]
        %v687 = vld [vmem:[#allocation10 + $0x70] sm:$0xff]
        %v688 = vld [vmem:[#allocation10 + $0x78] sm:$0xff]
        %689 = vmatprep.subr.mxu0 0.0
        %690 = vmatpush1.msra.mxu0 %v673
        %691 = vmatprep.subr.mxu0 0.0
        %692 = vmatpush1.msra.mxu0 %v674
        %693 = vmatprep.subr.mxu0 0.0
        %694 = vmatpush1.msra.mxu0 %v675
        %695 = vmatprep.subr.mxu0 0.0
        %696 = vmatpush1.msra.mxu0 %v676
        %697 = vmatprep.subr.mxu0 0.0
        %698 = vmatpush1.msra.mxu0 %v677
        %699 = vmatprep.subr.mxu0 0.0
        %700 = vmatpush1.msra.mxu0 %v678
        %701 = vmatprep.subr.mxu0 0.0
        %702 = vmatpush1.msra.mxu0 %v679
        %703 = vmatprep.subr.mxu0 0.0
        %704 = vmatpush1.msra.mxu0 %v680
        %705 = vmatprep.subr.mxu0 0.0
        %706 = vmatpush1.msra.mxu0 %v681
        %707 = vmatprep.subr.mxu0 0.0
        %708 = vmatpush1.msra.mxu0 %v682
        %709 = vmatprep.subr.mxu0 0.0
        %710 = vmatpush1.msra.mxu0 %v683
        %711 = vmatprep.subr.mxu0 0.0
        %712 = vmatpush1.msra.mxu0 %v684
        %713 = vmatprep.subr.mxu0 0.0
        %714 = vmatpush1.msra.mxu0 %v685
        %715 = vmatprep.subr.mxu0 0.0
        %716 = vmatpush1.msra.mxu0 %v686
        %717 = vmatprep.subr.mxu0 0.0
        %718 = vmatpush1.msra.mxu0 %v687
        %719 = vmatprep.subr.mxu0 0.0
        %720 = vmatpush1.msra.mxu0 %v688
        %721 = vmatprep.subr.mxu0 0.0
        %722 = vmatpush1.msra.mxu0 0.0
        %723 = vmatprep.subr.mxu0 0.0
        %724 = vmatpush1.msra.mxu0 0.0
        %725 = vmatprep.subr.mxu0 0.0
        %726 = vmatpush1.msra.mxu0 0.0
        %727 = vmatprep.subr.mxu0 0.0
        %728 = vmatpush1.msra.mxu0 0.0
        %729 = vmatprep.subr.mxu0 0.0
        %730 = vmatpush1.msra.mxu0 0.0
        %731 = vmatprep.subr.mxu0 0.0
        %732 = vmatpush1.msra.mxu0 0.0
        %733 = vmatprep.subr.mxu0 0.0
        %734 = vmatpush1.msra.mxu0 0.0
        %735 = vmatprep.subr.mxu0 0.0
        %736 = vmatpush1.msra.mxu0 0.0
        %737 = vmatprep.subr.mxu0 0.0
        %738 = vmatpush1.msra.mxu0 0.0
        %739 = vmatprep.subr.mxu0 0.0
        %740 = vmatpush1.msra.mxu0 0.0
        %741 = vmatprep.subr.mxu0 0.0
        %742 = vmatpush1.msra.mxu0 0.0
        %743 = vmatprep.subr.mxu0 0.0
        %744 = vmatpush1.msra.mxu0 0.0
        %745 = vmatprep.subr.mxu0 0.0
        %746 = vmatpush1.msra.mxu0 0.0
        %747 = vmatprep.subr.mxu0 0.0
        %748 = vmatpush1.msra.mxu0 0.0
        %749 = vmatprep.subr.mxu0 0.0
        %750 = vmatpush1.msra.mxu0 0.0
        %751 = vmatprep.subr.mxu0 0.0
        %752 = vmatpush1.msra.mxu0 0.0
        %753 = vmatprep.mubr.f32.mxu0 0.0
        %754 = vmatmul.mubr.f32.gmra.mrb[0].mxu0 %v672
        %v755 = vpop.f32.mrb[0].mxu0
        %v756 = vadd.f32 0.0, %v755
        %v757 = vpop.f32.mrb[0].mxu0
        %758 = vdwg.mxu0
        %v759 = vadd.f32 %v552, %v756
        %v760 = vtanh.pop %v759
        %v761 = vsub.f32 %v760, %v348
        %v762 = vmul.f32 %v669, %v761
        %v763 = vadd.f32 %v348, %v762
        %764 = vst [vmem:[%s346] sm:$0xff] %v763
        %s765 = sand.u32 %s171, 1
        %s766 = scalar_lea.sflag [#allocation4], %s765
        %s767 = sand.u32 %s171, 1
        %s768 = smul.addr %s767, 8
        %s769 = scalar_lea.vmem [#allocation11], %s768
        // Predicated region
        $region65: #{tpu_custom_call.1} parent=43 // pred_check
          %p770 = pneg %p181
        $region66: #{tpu_custom_call.1} parent=43 // pred_check_branch
          %772 = sbr.rel (%p770) target = $region68
        $region67: #{tpu_custom_call.1} parent=43 // pred_region
          %s774 = ssub.s32 128, 128
          %775 = vsyncadd %s766, %s774
          %s776 = smul.addr %s27, 128
          %s777 = scalar_lea.hbm %s6, %s776
          %s779 = sshll.u32 %s769, 4
          %s780 = int_to_ptr.vmem [resolvable:$true] %s779
          %782 = dma.vmem_to_hbm [thread:$0]  %s780, 128, %s777, %s766
        $region68: #{tpu_custom_call.1} parent=43 // pred_fallthru
          _
      $region44: #{tpu_custom_call.1} parent=5 // pred_fallthru
        _
      %p783 = scmp.le.s32.totalorder 2, %s22
      // Predicated region
      $region69: #{tpu_custom_call.1} parent=5 // pred_check
        %p784 = pneg %p783
      $region70: #{tpu_custom_call.1} parent=5 // pred_check_branch
        %786 = sbr.rel (%p784) target = $region72
      $region71: #{tpu_custom_call.1} parent=5 // pred_region
        %s787 = ssub.s32 %s22, 2
        // Predicated region
        $region73: #{tpu_custom_call.1} parent=71 // pred_check
          %p788 = pneg %p187
        $region74: #{tpu_custom_call.1} parent=71 // pred_check_branch
          %790 = sbr.rel (%p788) target = $region76
        $region75: #{tpu_custom_call.1} parent=71 // pred_region
          %s791 = sand.u32 %s172, 1
          %s792 = scalar_lea.sflag [#allocation4], %s791
          %s793 = sand.u32 %s172, 1
          %s794 = smul.addr %s793, 8
          %s795 = scalar_lea.vmem [#allocation11], %s794
          %796 = dma.done %s792, 128
        $region76: #{tpu_custom_call.1} parent=71 // pred_fallthru
          _
      $region72: #{tpu_custom_call.1} parent=5 // pred_fallthru
        _
    $region6: #{tpu_custom_call.1} parent=1 // loop_footer
      %s26 = sadd.s32 1, %s22
    $region7: #{tpu_custom_call.1} parent=1 // loop_footer_branch
      %21 = sbr.rel target = $region3
    $region8: #{tpu_custom_call.1} parent=1 // loop_exit
      _
    %797 = vsyncpa [#allocation3], 1
    %s798 = scalar_lea.sflag [#allocation3], 1
    %799 = vsyncpa %s798, 1
    %800 = vsyncpa [#allocation6], 1
    %s801 = scalar_lea.sflag [#allocation6], 1
    %802 = vsyncpa %s801, 1
    %803 = vsyncpa [#allocation9], 1
    %804 = vsyncpa [#allocation4], 1
    %s805 = scalar_lea.sflag [#allocation4], 1
    %806 = vsyncpa %s805, 1

</llo_original>
